<compile_context>
chip_gen: v6e
topology: v6e:2x2x1
jax: 0.10.0
libtpu: 0.0.40
codegen_flags: <defaults>
</compile_context>

<pallas_src>
import functools

import jax
import jax.numpy as jnp
import numpy as np
from jax.experimental import pallas as pl
from jax.experimental.pallas import tpu as pltpu

_LANE = 128
_TARGET_BLOCK_BYTES = 1 << 20  # ~1 MiB per operand block


def _add_fusion_kernel(t_ref, g_ref, o_ref, *, tile_w, w_text, w_graph):
    """One (B, tile_w) lane-dense tile of the flattened fused output.

    Flat column c of batch row b corresponds to (seq, hidden) = divmod(c, H) in BOTH
    inputs and the output, so sequence padding reduces to masking columns >= w_text /
    w_graph (those lanes may come from a clamped / trailing-edge block and hold
    unspecified data).
    """
    j = pl.program_id(0)
    b, tw = o_ref.shape
    col = j * tile_w + jax.lax.broadcasted_iota(jnp.int32, (b, tw), 1)
    zero = jnp.zeros((), o_ref.dtype)
    t = jnp.where(col < w_text, t_ref[...], zero)
    g = jnp.where(col < w_graph, g_ref[...], zero)
    o_ref[...] = t + g


def _choose_tile_width(batch, w_text, w_graph, itemsize):
    """Lane-tile width: ~1 MiB per operand block, multiple of 128 lanes."""
    target = max(_LANE, (_TARGET_BLOCK_BYTES // (batch * itemsize)) // _LANE * _LANE)
    # Keep the tile no wider than the shorter input (rounded down to a lane multiple)
    # so every input block is a standard full or trailing-edge block.
    cap = max(_LANE, (min(w_text, w_graph) // _LANE) * _LANE)
    return min(target, cap)


def modal_fusion_add(features_text: jax.Array, features_graph: jax.Array):
    """Pallas implementation of Modal_Fusion(config=None) i.e. Add_Fusion.forward."""
    assert features_text.ndim == 3 and features_graph.ndim == 3
    B, S_t, H = features_text.shape
    Bg, S_g, Hg = features_graph.shape
    assert B == Bg and H == Hg
    assert features_text.dtype == features_graph.dtype
    dtype = features_text.dtype

    S_max = max(S_t, S_g)
    w_t, w_g, w_out = S_t * H, S_g * H, S_max * H

    # Free, layout-preserving reshapes to lane-dense 2D slabs (no HBM copy).
    t2d = features_text.reshape(B, w_t)
    g2d = features_graph.reshape(B, w_g)

    tile_w = _choose_tile_width(B, w_t, w_g, jnp.dtype(dtype).itemsize)
    n_out_blocks = pl.cdiv(w_out, tile_w)
    n_t_blocks = pl.cdiv(w_t, tile_w)
    n_g_blocks = pl.cdiv(w_g, tile_w)

    kernel = functools.partial(
        _add_fusion_kernel, tile_w=tile_w, w_text=w_t, w_graph=w_g)

    fused2d = pl.pallas_call(
        kernel,
        out_shape=jax.ShapeDtypeStruct((B, w_out), dtype),
        grid=(n_out_blocks,),
        in_specs=[
            # Clamp the block index for the shorter tensor; the kernel masks it out.
            pl.BlockSpec((B, tile_w), lambda j: (0, jnp.minimum(j, n_t_blocks - 1))),
            pl.BlockSpec((B, tile_w), lambda j: (0, jnp.minimum(j, n_g_blocks - 1))),
        ],
        out_specs=pl.BlockSpec((B, tile_w), lambda j: (0, j)),
        compiler_params=pltpu.CompilerParams(dimension_semantics=("parallel",)),
    )(t2d, g2d)

    fused = fused2d.reshape(B, S_max, H)

    # combined_attention_mask = mask_text * mask_graph. It depends only on static
    # shapes, so build it with plain jnp (float32, matching torch.ones) outside
    # the kernel -> no lane-sparse (B, S) output in the Pallas call.
    mask = jnp.broadcast_to(
        (jnp.arange(S_max, dtype=jnp.int32) < min(S_t, S_g)).astype(jnp.float32)[None, :],
        (B, S_max),
    )
    return fused, mask


def _reference(features_text, features_graph):
    """Pure-JAX reference mirroring the PyTorch Add_Fusion forward."""
    B, S_t, H = features_text.shape
    _, S_g, _ = features_graph.shape
    S = max(S_t, S_g)
    mask_t = jnp.concatenate(
        [jnp.ones((B, S_t), jnp.float32), jnp.zeros((B, S - S_t), jnp.float32)], axis=1)
    mask_g = jnp.concatenate(
        [jnp.ones((B, S_g), jnp.float32), jnp.zeros((B, S - S_g), jnp.float32)], axis=1)
    ft = jnp.pad(features_text, ((0, 0), (0, S - S_t), (0, 0)))
    fg = jnp.pad(features_graph, ((0, 0), (0, S - S_g), (0, 0)))
    return ft + fg, mask_t * mask_g


if __name__ == "__main__":
    key = jax.random.PRNGKey(0)
    k1, k2 = jax.random.split(key)

    B, H = 2, 32
    S_text, S_graph = 8, 6  # unequal lengths to exercise the in-kernel padding/mask logic

    features_text = jax.random.normal(k1, (B, S_text, H), dtype=jnp.float32)
    features_graph = jax.random.normal(k2, (B, S_graph, H), dtype=jnp.float32)

    # Case 1: text longer than graph.
    fused, mask = modal_fusion_add(features_text, features_graph)
    jax.block_until_ready((fused, mask))
    ref_fused, ref_mask = _reference(features_text, features_graph)
    np.testing.assert_allclose(np.asarray(fused), np.asarray(ref_fused), rtol=1e-6, atol=1e-6)
    np.testing.assert_allclose(np.asarray(mask), np.asarray(ref_mask), rtol=0, atol=0)

    # Case 2: graph longer than text (swap the operands).
    fused2, mask2 = modal_fusion_add(features_graph, features_text)
    jax.block_until_ready((fused2, mask2))
    ref_fused2, ref_mask2 = _reference(features_graph, features_text)
    np.testing.assert_allclose(np.asarray(fused2), np.asarray(ref_fused2), rtol=1e-6, atol=1e-6)
    np.testing.assert_allclose(np.asarray(mask2), np.asarray(ref_mask2), rtol=0, atol=0)

    print("KERNEL_OK")
</pallas_src>

<mosaic_0001>
module attributes {stable_mosaic.version = 11 : i64} {
  func.func @_add_fusion_kernel(%arg0: i32, %arg1: memref<2x128xf32, #tpu.memory_space<vmem>>, %arg2: memref<2x128xf32, #tpu.memory_space<vmem>>, %arg3: memref<2x128xf32, #tpu.memory_space<vmem>>) attributes {dimension_semantics = [#tpu.dimension_semantics<parallel>], iteration_bounds = array<i64: 2>, scalar_prefetch = 0 : i64, scratch_operands = 0 : i64, tpu.core_type = #tpu.core_type<tc>, window_params = [{transform_indices = @transform_0, window_bounds = array<i64: 2, 128>}, {transform_indices = @transform_1, window_bounds = array<i64: 2, 128>}, {transform_indices = @transform_2, window_bounds = array<i64: 2, 128>}]} {
    %c128_i32 = arith.constant 128 : i32
    %0 = arith.muli %arg0, %c128_i32 : i32
    %1 = tpu.iota {dimensions = array<i32: 1>} : vector<2x128xi32>
    %2 = vector.broadcast %0 : i32 to vector<2x128xi32>
    %3 = arith.addi %2, %1 : vector<2x128xi32>
    %c256_i32 = arith.constant 256 : i32
    %4 = vector.broadcast %c256_i32 : i32 to vector<2x128xi32>
    %5 = arith.cmpi slt, %3, %4 : vector<2x128xi32>
    %c0 = arith.constant 0 : index
    %c0_0 = arith.constant 0 : index
    %6 = vector.load %arg1[%c0, %c0_0] : memref<2x128xf32, #tpu.memory_space<vmem>>, vector<2x128xf32>
    %cst = arith.constant 0.000000e+00 : f32
    %7 = vector.broadcast %cst : f32 to vector<2x128xf32>
    %8 = arith.select %5, %6, %7 : vector<2x128xi1>, vector<2x128xf32>
    %c192_i32 = arith.constant 192 : i32
    %9 = vector.broadcast %c192_i32 : i32 to vector<2x128xi32>
    %10 = arith.cmpi slt, %3, %9 : vector<2x128xi32>
    %c0_1 = arith.constant 0 : index
    %c0_2 = arith.constant 0 : index
    %11 = vector.load %arg2[%c0_1, %c0_2] : memref<2x128xf32, #tpu.memory_space<vmem>>, vector<2x128xf32>
    %cst_3 = arith.constant 0.000000e+00 : f32
    %12 = vector.broadcast %cst_3 : f32 to vector<2x128xf32>
    %13 = arith.select %10, %11, %12 : vector<2x128xi1>, vector<2x128xf32>
    %14 = arith.addf %8, %13 : vector<2x128xf32>
    %c0_4 = arith.constant 0 : index
    %c0_5 = arith.constant 0 : index
    %15 = vector.load %arg3[%c0_4, %c0_5] : memref<2x128xf32, #tpu.memory_space<vmem>>, vector<2x128xf32>
    tpu.vector_store %arg3[%c0_4, %c0_5], %14 {strides = array<i32>} : memref<2x128xf32, #tpu.memory_space<vmem>>, vector<2x128xf32>,
    return
  }
  func.func @transform_0(%arg0: i32) -> (i32, i32) {
    %c1_i32 = arith.constant 1 : i32
    %0 = arith.minsi %arg0, %c1_i32 : i32
    %c0_i32 = arith.constant 0 : i32
    %c0_i32_0 = arith.constant 0 : i32
    return %c0_i32, %0 : i32, i32
  }
  func.func @transform_1(%arg0: i32) -> (i32, i32) {
    %c1_i32 = arith.constant 1 : i32
    %0 = arith.minsi %arg0, %c1_i32 : i32
    %c0_i32 = arith.constant 0 : i32
    %c0_i32_0 = arith.constant 0 : i32
    return %c0_i32, %0 : i32, i32
  }
  func.func @transform_2(%arg0: i32) -> (i32, i32) {
    %c0_i32 = arith.constant 0 : i32
    %c0_i32_0 = arith.constant 0 : i32
    return %c0_i32, %arg0 : i32, i32
  }
}

</mosaic_0001>

<llo_original>
// kernel: tpu_custom_call.1
$region0: #{tpu_custom_call.1}
  #allocation0 [shape = 'u32[]', space=smem, size = 0x4, offset = 0x4, fixed_abs, tag = 'smem constant byte address 0x4 - core index']
  #allocation1 [shape = 'u32[144,128]{1,0:T(1,128)}', space=vmem, size = 0x12000, scoped, tag = 'internal scratch']
  %s0 = inlined_call_operand.hbm [shape: f32[2,256], index: 0, kind: input, shape index: {}]
  %s1 = inlined_call_operand.hbm [shape: f32[2,192], index: 1, kind: input, shape index: {}]
  %s2 = inlined_call_operand.hbm [shape: f32[2,256], index: 2, kind: output, shape index: {}]
  %s3 = sld [smem:[#allocation0]]
  $region49: #{tpu_custom_call.1} parent=0
    _
  %s5 = ssub.s32 1, %s3
  %s6 = scalar_select 0, %s5, %s3
  $region1: #{tpu_custom_call.1} parent=0
    #allocation2 [shape = 'u8[2048]{0}', space=vmem, size = 0x800, scoped, tag = 'input window, operand 0']
    #allocation3 [shape = 's32[2]{0}', space=sflag, size = 0x8, scoped, tag = 'scoped memory for tpu_custom_call.1']
    #allocation4 [shape = 's32[2]{0}', space=sflag, size = 0x8, scoped, tag = 'scoped memory for tpu_custom_call.1']
    #allocation5 [shape = 'u8[2048]{0}', space=vmem, size = 0x800, scoped, tag = 'input window, operand 1']
    #allocation6 [shape = 's32[2]{0}', space=sflag, size = 0x8, scoped, tag = 'scoped memory for tpu_custom_call.1']
    #allocation7 [shape = 'u8[2048]{0}', space=vmem, size = 0x800, scoped, tag = 'output window, operand 0']
    %7 = vsyncpa [#allocation3], 0
    %s8 = scalar_lea.sflag [#allocation3], 1
    %9 = vsyncpa %s8, 0
    %10 = vsyncpa [#allocation6], 0
    %s11 = scalar_lea.sflag [#allocation6], 1
    %12 = vsyncpa %s11, 0
    %13 = vsyncpa [#allocation4], 0
    %s14 = scalar_lea.sflag [#allocation4], 1
    %15 = vsyncpa %s14, 0
    loop: start=0, step=1, limit=4
    $region2: #{tpu_custom_call.1} parent=1 // loop_pre_header
      _
    $region3: #{tpu_custom_call.1} parent=1 // loop_header
      %s17 = sphi 0, %s21
      %p18 = scmp.ge.s32.totalorder %s17, 4
      %s31 = sphi 0, %s33
      %s34 = sphi 0, %s31
      %s35 = sphi 0, %s34
      %s51 = sphi 0, %s35
      %s61 = sphi 0, %s63
      %s64 = sphi 0, %s61
      %s65 = sphi 0, %s64
      %s81 = sphi 0, %s65
      %s87 = sphi 0, %s89
      %s90 = sphi 0, %s87
      %s91 = sphi 0, %s90
      %s107 = sphi 0, %s91
    $region4: #{tpu_custom_call.1} parent=1 // loop_header_branch
      %20 = sbr.rel (%p18) target = $region8
    $region5: #{tpu_custom_call.1} parent=1 // loop_body
      %s22 = ssub.s32 %s17, 1
      %s23 = ssub.s32 %s17, 2
      %s24 = sadd.s32 %s17, 1
      %p25 = scmp.lt.s32.totalorder %s17, 1
      %s26 = scalar_select %p25, %s17, 1
      %p27 = scmp.lt.s32.totalorder %s24, 1
      %s28 = scalar_select %p27, %s24, 1
      %s29 = ssub.s32 %s26, %s28
      %p30 = scmp.eq.s32.totalorder %s29, 0
      %s32 = sadd.s32 %s31, 1
      %s33 = scalar_select %p30, %s31, %s32
      %p36 = pneg %p30
      %p37 = scmp.eq.s32.totalorder %s17, 1
      %p38 = por %p36, %p37
      %p39 = scmp.ne.s32.totalorder %s31, %s34
      %p40 = scmp.eq.s32.totalorder %s17, 0
      %p41 = por %p39, %p40
      %p42 = scmp.ne.s32.totalorder %s31, %s34
      %p43 = scmp.eq.s32.totalorder %s22, 1
      %p44 = por %p42, %p43
      %p45 = scmp.ne.s32.totalorder %s34, %s35
      %p46 = scmp.eq.s32.totalorder %s22, 0
      %p47 = por %p45, %p46
      %p48 = scmp.ne.s32.totalorder %s34, %s35
      %p49 = scmp.eq.s32.totalorder %s23, 1
      %p50 = por %p48, %p49
      %p52 = scmp.ne.s32.totalorder %s35, %s51
      %p53 = scmp.eq.s32.totalorder %s23, 0
      %p54 = por %p52, %p53
      %p55 = scmp.lt.s32.totalorder %s17, 1
      %s56 = scalar_select %p55, %s17, 1
      %p57 = scmp.lt.s32.totalorder %s24, 1
      %s58 = scalar_select %p57, %s24, 1
      %s59 = ssub.s32 %s56, %s58
      %p60 = scmp.eq.s32.totalorder %s59, 0
      %s62 = sadd.s32 %s61, 1
      %s63 = scalar_select %p60, %s61, %s62
      %p66 = pneg %p60
      %p67 = scmp.eq.s32.totalorder %s17, 1
      %p68 = por %p66, %p67
      %p69 = scmp.ne.s32.totalorder %s61, %s64
      %p70 = scmp.eq.s32.totalorder %s17, 0
      %p71 = por %p69, %p70
      %p72 = scmp.ne.s32.totalorder %s61, %s64
      %p73 = scmp.eq.s32.totalorder %s22, 1
      %p74 = por %p72, %p73
      %p75 = scmp.ne.s32.totalorder %s64, %s65
      %p76 = scmp.eq.s32.totalorder %s22, 0
      %p77 = por %p75, %p76
      %p78 = scmp.ne.s32.totalorder %s64, %s65
      %p79 = scmp.eq.s32.totalorder %s23, 1
      %p80 = por %p78, %p79
      %p82 = scmp.ne.s32.totalorder %s65, %s81
      %p83 = scmp.eq.s32.totalorder %s23, 0
      %p84 = por %p82, %p83
      %s85 = ssub.s32 %s17, %s24
      %p86 = scmp.eq.s32.totalorder %s85, 0
      %s88 = sadd.s32 %s87, 1
      %s89 = scalar_select %p86, %s87, %s88
      %p92 = pneg %p86
      %p93 = scmp.eq.s32.totalorder %s17, 1
      %p94 = por %p92, %p93
      %p95 = scmp.ne.s32.totalorder %s87, %s90
      %p96 = scmp.eq.s32.totalorder %s17, 0
      %p97 = por %p95, %p96
      %p98 = scmp.ne.s32.totalorder %s87, %s90
      %p99 = scmp.eq.s32.totalorder %s22, 1
      %p100 = por %p98, %p99
      %p101 = scmp.ne.s32.totalorder %s90, %s91
      %p102 = scmp.eq.s32.totalorder %s22, 0
      %p103 = por %p101, %p102
      %p104 = scmp.ne.s32.totalorder %s90, %s91
      %p105 = scmp.eq.s32.totalorder %s23, 1
      %p106 = por %p104, %p105
      %p108 = scmp.ne.s32.totalorder %s91, %s107
      %p109 = scmp.eq.s32.totalorder %s23, 0
      %p110 = por %p108, %p109
      %p111 = scmp.le.s32.totalorder 1, %s17
      %p112 = scmp.lt.s32.totalorder %s17, 3
      %p113 = pnand %p111, %p112
      %p114 = pneg %p113
      // Predicated region
      $region9: #{tpu_custom_call.1} parent=5 // pred_check
        _
      $region10: #{tpu_custom_call.1} parent=5 // pred_check_branch
        %116 = sbr.rel (%p113) target = $region12
      $region11: #{tpu_custom_call.1} parent=5 // pred_region
        %s117 = ssub.s32 %s17, 1
      $region12: #{tpu_custom_call.1} parent=5 // pred_fallthru
        _
      %p118 = scmp.lt.s32.totalorder %s17, 2
      // Predicated region
      $region13: #{tpu_custom_call.1} parent=5 // pred_check
        %p119 = pneg %p118
      $region14: #{tpu_custom_call.1} parent=5 // pred_check_branch
        %121 = sbr.rel (%p119) target = $region16
      $region15: #{tpu_custom_call.1} parent=5 // pred_region
        // Predicated region
        $region17: #{tpu_custom_call.1} parent=15 // pred_check
          %p122 = pneg %p41
        $region18: #{tpu_custom_call.1} parent=15 // pred_check_branch
          %124 = sbr.rel (%p122) target = $region20
        $region19: #{tpu_custom_call.1} parent=15 // pred_region
          %s125 = sand.u32 %s31, 1
          %s126 = scalar_lea.sflag [#allocation3], %s125
          %s127 = sand.u32 %s31, 1
          %s128 = smul.addr %s127, 2
          %s129 = scalar_lea.vmem [#allocation2], %s128
          %p130 = scmp.lt.s32.totalorder %s17, 1
          %s131 = scalar_select %p130, %s17, 1
          %s133 = ssub.s32 32, 32
          %134 = vsyncadd %s126, %s133
          %s135 = smul.addr %s131, 32
          %s136 = scalar_lea.hbm %s0, %s135
          %s138 = sshll.u32 %s129, 4
          %s139 = int_to_ptr.vmem [resolvable:$true] %s138
          %141 = dma.hbm_to_vmem [thread:$0]  %s136, 32, %s139, %s126
        $region20: #{tpu_custom_call.1} parent=15 // pred_fallthru
          _
        // Predicated region
        $region21: #{tpu_custom_call.1} parent=15 // pred_check
          %p142 = pneg %p71
        $region22: #{tpu_custom_call.1} parent=15 // pred_check_branch
          %144 = sbr.rel (%p142) target = $region24
        $region23: #{tpu_custom_call.1} parent=15 // pred_region
          %s145 = sand.u32 %s61, 1
          %s146 = scalar_lea.sflag [#allocation6], %s145
          %s147 = sand.u32 %s61, 1
          %s148 = smul.addr %s147, 2
          %s149 = scalar_lea.vmem [#allocation5], %s148
          %p150 = scmp.lt.s32.totalorder %s17, 1
          %s151 = scalar_select %p150, %s17, 1
          %s153 = ssub.s32 32, 32
          %154 = vsyncadd %s146, %s153
          %s155 = smul.addr %s151, 32
          %s156 = scalar_lea.hbm %s1, %s155
          %s158 = sshll.u32 %s149, 4
          %s159 = int_to_ptr.vmem [resolvable:$true] %s158
          %161 = dma.hbm_to_vmem [thread:$0]  %s156, 32, %s159, %s146
        $region24: #{tpu_custom_call.1} parent=15 // pred_fallthru
          _
      $region16: #{tpu_custom_call.1} parent=5 // pred_fallthru
        _
      %p162 = scmp.le.s32.totalorder 1, %s17
      %p163 = scmp.lt.s32.totalorder %s17, 3
      %p164 = pnand %p162, %p163
      %p165 = pneg %p164
      // Predicated region
      $region25: #{tpu_custom_call.1} parent=5 // pred_check
        _
      $region26: #{tpu_custom_call.1} parent=5 // pred_check_branch
        %167 = sbr.rel (%p164) target = $region28
      $region27: #{tpu_custom_call.1} parent=5 // pred_region
        %s168 = ssub.s32 %s17, 1
        %s169 = sand.u32 %s34, 1
        %s170 = scalar_lea.sflag [#allocation3], %s169
        %s171 = sand.u32 %s34, 1
        %s172 = smul.addr %s171, 2
        %s173 = scalar_lea.vmem [#allocation2], %s172
        // Predicated region
        $region29: #{tpu_custom_call.1} parent=27 // pred_check
          %p174 = pneg %p47
        $region30: #{tpu_custom_call.1} parent=27 // pred_check_branch
          %176 = sbr.rel (%p174) target = $region32
        $region31: #{tpu_custom_call.1} parent=27 // pred_region
          %177 = dma.done %s170, 32
        $region32: #{tpu_custom_call.1} parent=27 // pred_fallthru
          _
        %s178 = sand.u32 %s64, 1
        %s179 = scalar_lea.sflag [#allocation6], %s178
        %s180 = sand.u32 %s64, 1
        %s181 = smul.addr %s180, 2
        %s182 = scalar_lea.vmem [#allocation5], %s181
        // Predicated region
        $region33: #{tpu_custom_call.1} parent=27 // pred_check
          %p183 = pneg %p77
        $region34: #{tpu_custom_call.1} parent=27 // pred_check_branch
          %185 = sbr.rel (%p183) target = $region36
        $region35: #{tpu_custom_call.1} parent=27 // pred_region
          %186 = dma.done %s179, 32
        $region36: #{tpu_custom_call.1} parent=27 // pred_fallthru
          _
        %s187 = sand.u32 %s34, 1
        %s188 = scalar_lea.sflag [#allocation3], %s187
        %s189 = sand.u32 %s34, 1
        %s190 = smul.addr %s189, 2
        %s191 = scalar_lea.vmem [#allocation2], %s190
        %p192 = pneg %p47
        %p193 = pneg %p44
        %s194 = sand.u32 %s64, 1
        %s195 = scalar_lea.sflag [#allocation6], %s194
        %s196 = sand.u32 %s64, 1
        %s197 = smul.addr %s196, 2
        %s198 = scalar_lea.vmem [#allocation5], %s197
        %p199 = pneg %p77
        %p200 = pneg %p74
        %p201 = pneg %p103
        %p202 = pneg %p100
        %s203 = sand.u32 %s90, 1
        %s204 = scalar_lea.sflag [#allocation4], %s203
        %s205 = sand.u32 %s90, 1
        %s206 = smul.addr %s205, 2
        %s207 = scalar_lea.vmem [#allocation7], %s206
        %p208 = scmp.lt.s32.totalorder %s22, 1
        %s209 = scalar_select %p208, %s22, 1
        %p210 = scmp.lt.s32.totalorder %s22, 1
        %s211 = scalar_select %p210, %s22, 1
        %s212 = smul.u32 %s22, 128
        %v213 = vlaneseq
        %v214 = vand.u32 %v213, 127
        %v215 = vstv %s212
        %v216 = vadd.s32 %v215, %v214
        %vm217 = vcmp.lt.s32.totalorder %v216, 256
        %v218 = vld [vmem:[%s173] sm:$0x3]
        %v219 = vsel %vm217, %v218, 0.0
        %vm220 = vcmp.lt.s32.totalorder %v216, 192
        %v221 = vld [vmem:[%s182] sm:$0x3]
        %v222 = vsel %vm220, %v221, 0.0
        %v223 = vadd.f32 %v219, %v222
        %224 = vst [vmem:[%s207] sm:$0x3] %v223
        %s225 = sand.u32 %s90, 1
        %s226 = scalar_lea.sflag [#allocation4], %s225
        %s227 = sand.u32 %s90, 1
        %s228 = smul.addr %s227, 2
        %s229 = scalar_lea.vmem [#allocation7], %s228
        // Predicated region
        $region37: #{tpu_custom_call.1} parent=27 // pred_check
          %p230 = pneg %p100
        $region38: #{tpu_custom_call.1} parent=27 // pred_check_branch
          %232 = sbr.rel (%p230) target = $region40
        $region39: #{tpu_custom_call.1} parent=27 // pred_region
          %s234 = ssub.s32 32, 32
          %235 = vsyncadd %s226, %s234
          %s236 = smul.addr %s22, 32
          %s237 = scalar_lea.hbm %s2, %s236
          %s239 = sshll.u32 %s229, 4
          %s240 = int_to_ptr.vmem [resolvable:$true] %s239
          %242 = dma.vmem_to_hbm [thread:$0]  %s240, 32, %s237, %s226
        $region40: #{tpu_custom_call.1} parent=27 // pred_fallthru
          _
      $region28: #{tpu_custom_call.1} parent=5 // pred_fallthru
        _
      %p243 = scmp.le.s32.totalorder 2, %s17
      // Predicated region
      $region41: #{tpu_custom_call.1} parent=5 // pred_check
        %p244 = pneg %p243
      $region42: #{tpu_custom_call.1} parent=5 // pred_check_branch
        %246 = sbr.rel (%p244) target = $region44
      $region43: #{tpu_custom_call.1} parent=5 // pred_region
        %s247 = ssub.s32 %s17, 2
        // Predicated region
        $region45: #{tpu_custom_call.1} parent=43 // pred_check
          %p248 = pneg %p106
        $region46: #{tpu_custom_call.1} parent=43 // pred_check_branch
          %250 = sbr.rel (%p248) target = $region48
        $region47: #{tpu_custom_call.1} parent=43 // pred_region
          %s251 = sand.u32 %s91, 1
          %s252 = scalar_lea.sflag [#allocation4], %s251
          %s253 = sand.u32 %s91, 1
          %s254 = smul.addr %s253, 2
          %s255 = scalar_lea.vmem [#allocation7], %s254
          %256 = dma.done %s252, 32
        $region48: #{tpu_custom_call.1} parent=43 // pred_fallthru
          _
      $region44: #{tpu_custom_call.1} parent=5 // pred_fallthru
        _
    $region6: #{tpu_custom_call.1} parent=1 // loop_footer
      %s21 = sadd.s32 1, %s17
    $region7: #{tpu_custom_call.1} parent=1 // loop_footer_branch
      %16 = sbr.rel target = $region3
    $region8: #{tpu_custom_call.1} parent=1 // loop_exit
      _
    %257 = vsyncpa [#allocation3], 1
    %s258 = scalar_lea.sflag [#allocation3], 1
    %259 = vsyncpa %s258, 1
    %260 = vsyncpa [#allocation6], 1
    %s261 = scalar_lea.sflag [#allocation6], 1
    %262 = vsyncpa %s261, 1
    %263 = vsyncpa [#allocation4], 1
    %s264 = scalar_lea.sflag [#allocation4], 1
    %265 = vsyncpa %s264, 1

</llo_original>
